<compile_context>
chip_gen: v6e
topology: v6e:2x2x1
jax: 0.10.0
libtpu: 0.0.40
codegen_flags: <defaults>
</compile_context>

<pallas_src>
import functools

import jax
import jax.numpy as jnp
from jax import lax
from jax.experimental import pallas as pl
from jax.experimental.pallas import tpu as pltpu


def _round_up(x: int, m: int) -> int:
    return ((x + m - 1) // m) * m


def _sublane_pack(dtype) -> int:
    # f32 -> 8, bf16 -> 16, int8/fp8 -> 32 sublanes per packed vreg row.
    return max(8, 32 // jnp.dtype(dtype).itemsize)


def _device_defaults():
    """(block_n, block_m, vmem_limit_bytes) tuned per TPU generation."""
    kind = ""
    try:
        kind = jax.devices()[0].device_kind.lower()
    except Exception:
        pass
    if "v6" in kind:
        # 128 MiB physical VMEM, ~1.3 TB/s HBM: 8 MiB steps hide per-step cost.
        return 2048, 1024, 64 * 1024 * 1024
    if "v5 lite" in kind or "v5e" in kind:
        # ~820 GB/s HBM: 4 MiB steps suffice; default scoped VMEM is only 16 MiB
        # so the explicit limit is load-bearing.
        return 2048, 512, 40 * 1024 * 1024
    # v7x (64 MiB physical VMEM) and unknown chips: stay <= ~48 MiB scoped.
    return 2048, 512, 48 * 1024 * 1024


def _oce_kernel(scal_ref, *refs, utility, n_actual, block_n, inv_n,
                has_target, mask_rows):
    """scal_ref (SMEM): [w, scalar_target]; refs: x[, target], out, acc."""
    if has_target:
        x_ref, t_ref, out_ref, acc_ref = refs
    else:
        x_ref, out_ref, acc_ref = refs

    k = pl.program_id(1)  # reduction (batch-tile) axis, last in the grid

    @pl.when(k == 0)
    def _init():
        acc_ref[...] = jnp.zeros_like(acc_ref)

    w = scal_ref[0]
    x = x_ref[...].astype(jnp.float32)
    if has_target:
        # t_ref is either (block_n, block_m) or a batch-invariant (1, block_m)
        # row; jnp broadcasting handles both.
        pnl = x - t_ref[...].astype(jnp.float32)
    else:
        pnl = x - scal_ref[1]          # scalar target straight from SMEM

    u = utility(pnl + w).astype(jnp.float32)

    # Mask batch rows past N (only when the last batch tile is ragged).
    if mask_rows:
        row = k * block_n + lax.broadcasted_iota(jnp.int32, u.shape, 0)
        u = jnp.where(row < n_actual, u, 0.0)

    # (8, block_m) partial sums: sublane-aligned slices + VPU adds only; the
    # cross-sublane XLU reduce is deferred to the finalize step.
    bn = u.shape[0]
    part = u[0:8, :]
    for i in range(1, bn // 8):
        part = part + u[i * 8:(i + 1) * 8, :]
    acc_ref[...] += part

    @pl.when(k == pl.num_programs(1) - 1)
    def _finalize():
        total = jnp.sum(acc_ref[...], axis=0, keepdims=True)
        out_ref[...] = (w - total * inv_n).astype(out_ref.dtype)


def _oce_kernel_1d(scal_ref, *refs, utility, n_actual, block_l, inv_n,
                   has_target, mask_lanes):
    """1-D (M == 1) path: the batch fills the lane axis; full reduction."""
    if has_target:
        x_ref, t_ref, out_ref, acc_ref = refs
    else:
        x_ref, out_ref, acc_ref = refs

    k = pl.program_id(0)

    @pl.when(k == 0)
    def _init():
        acc_ref[...] = jnp.zeros_like(acc_ref)

    w = scal_ref[0]
    x = x_ref[...].astype(jnp.float32)            # (1, block_l)
    if has_target:
        pnl = x - t_ref[...].astype(jnp.float32)
    else:
        pnl = x - scal_ref[1]

    u = utility(pnl + w).astype(jnp.float32)

    if mask_lanes:
        col = k * block_l + lax.broadcasted_iota(jnp.int32, u.shape, 1)
        u = jnp.where(col < n_actual, u, 0.0)

    acc_ref[...] += u

    @pl.when(k == pl.num_programs(0) - 1)
    def _finalize():
        total = jnp.sum(acc_ref[...], axis=1, keepdims=True)   # (1, 1)
        out_ref[...] = jnp.broadcast_to(w - total * inv_n,
                                        out_ref.shape).astype(out_ref.dtype)


def oce_loss(x, target=0.0, w=0.0, *, utility,
             block_m=None, block_n=None, vmem_limit_bytes=None):
    """Pallas implementation of OCE(utility, w)(x, target).

    x:      (N, *) float array; batch axis 0 is reduced by the mean.
    target: scalar (kept in SMEM), a batch-invariant array broadcastable to
            x.shape[1:] (streamed as a single (1, M) row), or an array
            broadcastable to x.shape (streamed as a second operand).
    w:      scalar wealth parameter.
    returns array of shape x.shape[1:] (0-d if x is 1-D).
    """
    x = jnp.asarray(x)
    assert x.ndim >= 1, "input must have a leading batch axis"
    N = x.shape[0]
    extra = x.shape[1:]
    M = 1
    for d in extra:
        M *= int(d)

    def_bn, def_bm, def_vmem = _device_defaults()
    block_n = def_bn if block_n is None else block_n
    block_m = def_bm if block_m is None else block_m
    vmem_limit_bytes = def_vmem if vmem_limit_bytes is None else vmem_limit_bytes

    w_f = jnp.asarray(w, jnp.float32).reshape(())
    t_arr = jnp.asarray(target)
    is_scalar_target = (t_arr.size == 1)
    inv_n = 1.0 / float(N)
    out_dtype = x.dtype

    # ------------------------- 1-D / M == 1 path -------------------------
    if M == 1:
        x2 = x.reshape(1, N)                       # free reshape, lane-dense
        bl = min(65536, _round_up(N, 128))
        grid = (pl.cdiv(N, bl),)
        mask_lanes = (N % bl) != 0

        if is_scalar_target:
            scal = jnp.stack([w_f, t_arr.astype(jnp.float32).reshape(())])
            operands = (scal, x2)
            in_specs = [pl.BlockSpec((1, bl), lambda k, s: (0, k))]
            has_target = False
        else:
            t_full = jnp.broadcast_to(t_arr.astype(x.dtype), x.shape).reshape(1, N)
            scal = jnp.stack([w_f, jnp.zeros((), jnp.float32)])
            operands = (scal, x2, t_full)
            in_specs = [pl.BlockSpec((1, bl), lambda k, s: (0, k)),
                        pl.BlockSpec((1, bl), lambda k, s: (0, k))]
            has_target = True

        kernel = functools.partial(
            _oce_kernel_1d, utility=utility, n_actual=N, block_l=bl,
            inv_n=inv_n, has_target=has_target, mask_lanes=mask_lanes)

        out = pl.pallas_call(
            kernel,
            out_shape=jax.ShapeDtypeStruct((1, 128), out_dtype),
            grid_spec=pltpu.PrefetchScalarGridSpec(
                num_scalar_prefetch=1,
                grid=grid,
                in_specs=in_specs,
                out_specs=pl.BlockSpec((1, 128), lambda k, s: (0, 0)),
                scratch_shapes=[pltpu.VMEM((1, bl), jnp.float32)],
            ),
            compiler_params=pltpu.CompilerParams(
                dimension_semantics=("arbitrary",),
                vmem_limit_bytes=vmem_limit_bytes),
        )(*operands)

        res = out[0, 0]
        return res.reshape(extra) if extra else res

    # --------------------------- general path ----------------------------
    x2 = x.reshape(N, M)                           # free reshape, no copies
    pack = _sublane_pack(x.dtype)
    bn = min(_round_up(block_n, pack), _round_up(N, pack))
    bm = min(_round_up(block_m, 128), _round_up(M, 128))
    grid = (pl.cdiv(M, bm), pl.cdiv(N, bn))        # (parallel M, arbitrary N)
    mask_rows = (N % bn) != 0

    if is_scalar_target:
        scal = jnp.stack([w_f, t_arr.astype(jnp.float32).reshape(())])
        operands = (scal, x2)
        in_specs = [pl.BlockSpec((bn, bm), lambda j, k, s: (k, j))]
        has_target = False
    else:
        scal = jnp.stack([w_f, jnp.zeros((), jnp.float32)])
        has_target = True
        batch_invariant = (t_arr.ndim < x.ndim) or (t_arr.shape[0] == 1)
        if batch_invariant:
            # Stream only a (1, M) row: halves HBM traffic vs broadcasting to
            # x.shape; broadcast across the batch happens inside the kernel.
            t_e = t_arr.reshape(t_arr.shape[1:]) if t_arr.ndim == x.ndim else t_arr
            t_row = jnp.broadcast_to(t_e.astype(x.dtype), extra).reshape(1, M)
            operands = (scal, x2, t_row)
            in_specs = [pl.BlockSpec((bn, bm), lambda j, k, s: (k, j)),
                        pl.BlockSpec((1, bm), lambda j, k, s: (0, j))]
        else:
            t_full = t_arr.astype(x.dtype)
            if t_full.shape != x.shape:
                t_full = jnp.broadcast_to(t_full, x.shape)
            operands = (scal, x2, t_full.reshape(N, M))
            in_specs = [pl.BlockSpec((bn, bm), lambda j, k, s: (k, j)),
                        pl.BlockSpec((bn, bm), lambda j, k, s: (k, j))]

    kernel = functools.partial(
        _oce_kernel, utility=utility, n_actual=N, block_n=bn, inv_n=inv_n,
        has_target=has_target, mask_rows=mask_rows)

    out = pl.pallas_call(
        kernel,
        out_shape=jax.ShapeDtypeStruct((1, M), out_dtype),
        grid_spec=pltpu.PrefetchScalarGridSpec(
            num_scalar_prefetch=1,
            grid=grid,
            in_specs=in_specs,
            out_specs=pl.BlockSpec((1, bm), lambda j, k, s: (0, j)),
            scratch_shapes=[pltpu.VMEM((8, bm), jnp.float32)],
        ),
        compiler_params=pltpu.CompilerParams(
            dimension_semantics=("parallel", "arbitrary"),
            vmem_limit_bytes=vmem_limit_bytes),
    )(*operands)

    return out[0].reshape(extra)


def _reference(x, target, w, utility):
    t = jnp.asarray(target, x.dtype)
    return w - jnp.mean(utility(x - t + w), axis=0)


if __name__ == "__main__":
    key = jax.random.PRNGKey(0)
    k1, k2, k3, k4 = jax.random.split(key, 4)

    # exponential utility from the pfhedge OCE docstring example
    utility = lambda x: 1.0 - jnp.exp(-x)

    failures = []

    def check(name, out, ref):
        jax.block_until_ready(out)
        if not jnp.allclose(out, ref, rtol=1e-5, atol=1e-5):
            failures.append((name, float(jnp.max(jnp.abs(out - ref)))))

    # (N, *) = (16, 4, 32): batch=16, extra dims (4, 32) -> M=128 lanes
    N, C, H = 16, 4, 32
    x = jax.random.normal(k1, (N, C, H), dtype=jnp.float32)
    tgt_full = 0.1 * jax.random.normal(k2, (N, C, H), dtype=jnp.float32)
    tgt_row = 0.1 * jax.random.normal(k3, (C, H), dtype=jnp.float32)

    check("scalar0", oce_loss(x, 0.0, 0.0, utility=utility),
          _reference(x, 0.0, 0.0, utility))
    check("scalar1", oce_loss(x, 0.25, 0.5, utility=utility),
          _reference(x, 0.25, 0.5, utility))
    check("array", oce_loss(x, tgt_full, -0.3, utility=utility),
          _reference(x, tgt_full, -0.3, utility))
    check("row", oce_loss(x, tgt_row, 0.2, utility=utility),
          _reference(x, tgt_row, 0.2, utility))

    # 1-D profit-and-loss (docstring shape, N=10): small-M lane-packed path
    pl1d = jax.random.normal(jax.random.PRNGKey(42), (10,), dtype=jnp.float32)
    check("pl1d", oce_loss(pl1d, 0.0, 0.0, utility=utility),
          _reference(pl1d, 0.0, 0.0, utility))

    # ragged shapes (no host-side padding): N=12 rows, M=132 lanes
    xr = jax.random.normal(k4, (12, 4, 33), dtype=jnp.float32)
    check("ragged", oce_loss(xr, 0.1, 0.05, utility=utility),
          _reference(xr, 0.1, 0.05, utility))

    if failures:
        for name, err in failures:
            print("MISMATCH:", name, err)
    else:
        print("KERNEL_OK")
</pallas_src>

<mosaic_0001>
module attributes {stable_mosaic.version = 11 : i64} {
  func.func @_oce_kernel(%arg0: i32, %arg1: i32, %arg2: memref<2xf32, #tpu.memory_space<smem>>, %arg3: memref<16x128xf32, #tpu.memory_space<vmem>>, %arg4: memref<1x128xf32, #tpu.memory_space<vmem>>, %arg5: memref<8x128xf32, #tpu.memory_space<vmem>>) attributes {dimension_semantics = [#tpu.dimension_semantics<parallel>, #tpu.dimension_semantics<arbitrary>], iteration_bounds = array<i64: 1, 1>, scalar_prefetch = 1 : i64, scratch_operands = 1 : i64, tpu.core_type = #tpu.core_type<tc>, window_params = [{transform_indices = @transform_0, window_bounds = array<i64: 16, 128>}, {transform_indices = @transform_1, window_bounds = array<i64: 1, 128>}]} {
    %c0_i32 = arith.constant 0 : i32
    %0 = arith.cmpi eq, %arg1, %c0_i32 : i32
    %1 = arith.extui %0 : i1 to i32
    %c0_i32_0 = arith.constant 0 : i32
    %2 = arith.cmpi ne, %1, %c0_i32_0 : i32
    scf.if %2 {
      %cst_10 = arith.constant 0.000000e+00 : f32
      %24 = vector.broadcast %cst_10 : f32 to vector<8x128xf32>
      %c0_11 = arith.constant 0 : index
      %c0_12 = arith.constant 0 : index
      %25 = vector.load %arg5[%c0_11, %c0_12] : memref<8x128xf32, #tpu.memory_space<vmem>>, vector<8x128xf32>
      tpu.vector_store %arg5[%c0_11, %c0_12], %24 {strides = array<i32>} : memref<8x128xf32, #tpu.memory_space<vmem>>, vector<8x128xf32>,
    } else {
    }
    %c0 = arith.constant 0 : index
    %3 = memref.load %arg2[%c0] : memref<2xf32, #tpu.memory_space<smem>>
    %c0_1 = arith.constant 0 : index
    %c0_2 = arith.constant 0 : index
    %4 = vector.load %arg3[%c0_1, %c0_2] : memref<16x128xf32, #tpu.memory_space<vmem>>, vector<16x128xf32>
    %c1 = arith.constant 1 : index
    %5 = memref.load %arg2[%c1] : memref<2xf32, #tpu.memory_space<smem>>
    %6 = vector.broadcast %5 : f32 to vector<16x128xf32>
    %7 = arith.subf %4, %6 : vector<16x128xf32>
    %8 = vector.broadcast %3 : f32 to vector<16x128xf32>
    %9 = arith.addf %7, %8 : vector<16x128xf32>
    %cst = arith.constant 0.000000e+00 : f32
    %10 = vector.broadcast %cst : f32 to vector<16x128xf32>
    %11 = arith.subf %10, %9 : vector<16x128xf32>
    %12 = math.exp %11 : vector<16x128xf32>
    %cst_3 = arith.constant 1.000000e+00 : f32
    %13 = vector.broadcast %cst_3 : f32 to vector<16x128xf32>
    %14 = arith.subf %13, %12 : vector<16x128xf32>
    %15 = vector.extract_strided_slice %14 {offsets = [0, 0], sizes = [8, 128], strides = [1, 1]} : vector<16x128xf32> to vector<8x128xf32>
    %16 = vector.extract_strided_slice %14 {offsets = [8, 0], sizes = [8, 128], strides = [1, 1]} : vector<16x128xf32> to vector<8x128xf32>
    %17 = arith.addf %15, %16 : vector<8x128xf32>
    %c0_4 = arith.constant 0 : index
    %c0_5 = arith.constant 0 : index
    %18 = vector.load %arg5[%c0_4, %c0_5] : memref<8x128xf32, #tpu.memory_space<vmem>>, vector<8x128xf32>
    %19 = arith.addf %18, %17 : vector<8x128xf32>
    %c0_6 = arith.constant 0 : index
    %c0_7 = arith.constant 0 : index
    %20 = vector.load %arg5[%c0_6, %c0_7] : memref<8x128xf32, #tpu.memory_space<vmem>>, vector<8x128xf32>
    tpu.vector_store %arg5[%c0_6, %c0_7], %19 {strides = array<i32>} : memref<8x128xf32, #tpu.memory_space<vmem>>, vector<8x128xf32>,
    %c0_i32_8 = arith.constant 0 : i32
    %21 = arith.cmpi eq, %arg1, %c0_i32_8 : i32
    %22 = arith.extui %21 : i1 to i32
    %c0_i32_9 = arith.constant 0 : i32
    %23 = arith.cmpi ne, %22, %c0_i32_9 : i32
    scf.if %23 {
      %c0_10 = arith.constant 0 : index
      %c0_11 = arith.constant 0 : index
      %24 = vector.load %arg5[%c0_10, %c0_11] : memref<8x128xf32, #tpu.memory_space<vmem>>, vector<8x128xf32>
      %cst_12 = arith.constant dense<0.000000e+00> : vector<128xf32>
      %25 = vector.multi_reduction <add>, %24, %cst_12 [0] : vector<8x128xf32> to vector<128xf32>
      %26 = vector.shape_cast %25 : vector<128xf32> to vector<1x128xf32>
      %cst_13 = arith.constant 6.250000e-02 : f32
      %27 = vector.broadcast %cst_13 : f32 to vector<1x128xf32>
      %28 = arith.mulf %26, %27 : vector<1x128xf32>
      %29 = vector.broadcast %3 : f32 to vector<1x128xf32>
      %30 = arith.subf %29, %28 : vector<1x128xf32>
      %c0_14 = arith.constant 0 : index
      %c0_15 = arith.constant 0 : index
      %31 = vector.load %arg4[%c0_14, %c0_15] : memref<1x128xf32, #tpu.memory_space<vmem>>, vector<1x128xf32>
      tpu.vector_store %arg4[%c0_14, %c0_15], %30 {strides = array<i32>} : memref<1x128xf32, #tpu.memory_space<vmem>>, vector<1x128xf32>,
    } else {
    }
    return
  }
  func.func @transform_0(%arg0: i32, %arg1: i32, %arg2: memref<2xf32, #tpu.memory_space<smem>>) -> (i32, i32) {
    %c0_i32 = arith.constant 0 : i32
    return %arg1, %arg0 : i32, i32
  }
  func.func @transform_1(%arg0: i32, %arg1: i32, %arg2: memref<2xf32, #tpu.memory_space<smem>>) -> (i32, i32) {
    %c0_i32 = arith.constant 0 : i32
    %c0_i32_0 = arith.constant 0 : i32
    return %c0_i32, %arg0 : i32, i32
  }
}

</mosaic_0001>

<llo_original>
// kernel: tpu_custom_call.1
$region0: #{tpu_custom_call.1}
  #allocation0 [shape = 'u32[]', space=smem, size = 0x4, offset = 0x4, fixed_abs, tag = 'smem constant byte address 0x4 - core index']
  #allocation1 [shape = 'u32[144,128]{1,0:T(1,128)}', space=vmem, size = 0x12000, scoped, tag = 'internal scratch']
  #allocation2 [shape = 'f32[8,128]{1,0:T(8,128)}', space=vmem, size = 0x1000, scoped, tag = 'scratch operand']
  #allocation3 [shape = 's32[1]{0}', space=sflag, size = 0x4, scoped, tag = 'scoped memory for tpu_custom_call.1']
  #allocation4 [shape = 'u8[512]{0}', space=smem, size = 0x200, scoped, tag = 'prefetched SMEM operand 0']
  %s0 = inlined_call_operand.hbm [shape: f32[2], index: 0, kind: input, shape index: {}]
  %s1 = inlined_call_operand.hbm [shape: f32[16,128], index: 1, kind: input, shape index: {}]
  %s2 = inlined_call_operand.hbm [shape: f32[1,128], index: 2, kind: output, shape index: {}]
  %s3 = sld [smem:[#allocation0]]
  $region26: #{tpu_custom_call.1} parent=0
    _
  %s5 = ssub.s32 1, %s3
  %s6 = scalar_select 0, %s5, %s3
  %8 = dma.hbm_to_smem %s0, 16, [#allocation4], [#allocation3]
  %9 = dma.done [#allocation3], 16
  %10 = sfence
  $region1: #{tpu_custom_call.1} parent=0
    #allocation5 [shape = 'u8[8192]{0}', space=vmem, size = 0x2000, scoped, tag = 'input window, operand 1, single buffered']
    #allocation6 [shape = 's32[1]{0}', space=sflag, size = 0x4, scoped, tag = 'scoped memory for tpu_custom_call.1']
    #allocation7 [shape = 's32[1]{0}', space=sflag, size = 0x4, scoped, tag = 'scoped memory for tpu_custom_call.1']
    #allocation8 [shape = 'u8[512]{0}', space=vmem, size = 0x400, scoped, tag = 'output window, operand 0, single buffered']
    %11 = vsyncpa [#allocation6], 0
    %12 = vsyncpa [#allocation7], 0
    // Predicated region
    $region2: #{tpu_custom_call.1} parent=1 // pred_check
      _
    $region3: #{tpu_custom_call.1} parent=1 // pred_check_branch
      %14 = sbr.rel (0) target = $region5
    $region4: #{tpu_custom_call.1} parent=1 // pred_region
      %s16 = ssub.s32 256, 256
      %17 = vsyncadd [#allocation6], %s16
      %s18 = sshll.u32 [#allocation5], 4
      %s19 = int_to_ptr.vmem [resolvable:$true] %s18
      %24 = dma.hbm_to_vmem [thread:$0]  %s1, 256, %s19, [#allocation6], 128, 128, 8
    $region5: #{tpu_custom_call.1} parent=1 // pred_fallthru
      _
    // Predicated region
    $region6: #{tpu_custom_call.1} parent=1 // pred_check
      _
    $region7: #{tpu_custom_call.1} parent=1 // pred_check_branch
      %26 = sbr.rel (0) target = $region9
    $region8: #{tpu_custom_call.1} parent=1 // pred_region
      %27 = dma.done [#allocation6], 256
    $region9: #{tpu_custom_call.1} parent=1 // pred_fallthru
      _
    %p28 = scmp.eq.s32.totalorder 0, 0
    // Predicated region
    $region10: #{tpu_custom_call.1} parent=1 // pred_check
      %p29 = pneg %p28
    $region11: #{tpu_custom_call.1} parent=1 // pred_check_branch
      %31 = sbr.rel (%p29) target = $region13
    $region12: #{tpu_custom_call.1} parent=1 // pred_region
      %32 = vst [vmem:[#allocation2] sm:$0xff] 0.0
    $region13: #{tpu_custom_call.1} parent=1 // pred_fallthru
      _
    %s33 = sld [smem:[#allocation4]]
    %v34 = vld [vmem:[#allocation5] sm:$0xff]
    %v35 = vld [vmem:[#allocation5 + $0x8] sm:$0xff]
    %s36 = sld [smem:[#allocation4 + $0x1]]
    %v37 = vstv %s36
    %v38 = vsub.f32 %v34, %v37
    %v39 = vsub.f32 %v35, %v37
    %v40 = vstv %s33
    %v41 = vadd.f32 %v38, %v40
    %v42 = vadd.f32 %v39, %v40
    %v43 = vsub.f32 0.0, %v41
    %v44 = vsub.f32 0.0, %v42
    %v45 = vmul.f32 %v43, 1.442695
    %v46 = vpow.pop %v45
    %v47 = vmul.f32 %v44, 1.442695
    %v48 = vpow.pop %v47
    %v49 = vsub.f32 1.0, %v46
    %v50 = vsub.f32 1.0, %v48
    %v51 = vadd.f32 %v49, %v50
    %v52 = vld [vmem:[#allocation2] sm:$0xff]
    %v53 = vadd.f32 %v52, %v51
    %54 = vst [vmem:[#allocation2] sm:$0xff] %v53
    // Predicated region
    $region14: #{tpu_custom_call.1} parent=1 // pred_check
      %p55 = pneg %p28
    $region15: #{tpu_custom_call.1} parent=1 // pred_check_branch
      %57 = sbr.rel (%p55) target = $region17
    $region16: #{tpu_custom_call.1} parent=1 // pred_region
      %v58 = vld [vmem:[#allocation2] sm:$0xff]
      %v59 = vrot.slane %v58, 4
      %v60 = vadd.f32 %v58, %v59
      %v61 = vrot.slane %v60, 2
      %v62 = vadd.f32 %v60, %v61
      %v63 = vrot.slane %v62, 1
      %v64 = vadd.f32 %v62, %v63
      %v65 = vmul.f32 %v64, 0.0625
      %v66 = vsub.f32 %v40, %v65
      %67 = vst [vmem:[#allocation8] sm:$0x1] %v66
    $region17: #{tpu_custom_call.1} parent=1 // pred_fallthru
      _
    // Predicated region
    $region18: #{tpu_custom_call.1} parent=1 // pred_check
      _
    $region19: #{tpu_custom_call.1} parent=1 // pred_check_branch
      %69 = sbr.rel (0) target = $region21
    $region20: #{tpu_custom_call.1} parent=1 // pred_region
      %s71 = ssub.s32 16, 16
      %72 = vsyncadd [#allocation7], %s71
      %s74 = sshll.u32 [#allocation8], 4
      %s75 = int_to_ptr.vmem [resolvable:$true] %s74
      %77 = dma.vmem_to_hbm [thread:$0]  %s75, 16, %s2, [#allocation7]
    $region21: #{tpu_custom_call.1} parent=1 // pred_fallthru
      _
    // Predicated region
    $region22: #{tpu_custom_call.1} parent=1 // pred_check
      _
    $region23: #{tpu_custom_call.1} parent=1 // pred_check_branch
      %79 = sbr.rel (0) target = $region25
    $region24: #{tpu_custom_call.1} parent=1 // pred_region
      %80 = dma.done [#allocation7], 16
    $region25: #{tpu_custom_call.1} parent=1 // pred_fallthru
      _
    %81 = vsyncpa [#allocation6], 1
    %82 = vsyncpa [#allocation7], 1

</llo_original>
